<compile_context>
chip_gen: v5e
topology: v5e:2x2
jax: 0.10.0
libtpu: 0.0.40
codegen_flags: <defaults>
</compile_context>

<pallas_src>
import jax
import jax.numpy as jnp
from jax import lax
from jax.experimental import pallas as pl
from jax.experimental.pallas import tpu as pltpu


def mlp_kernel(x_ref, w0_ref, b0_ref, wh_ref, bh_ref, wf_ref, bf_ref, o_ref):
    # Layer 0: contract over num_inputs directly on the native (tile_b, n_in)
    # block -> (width, tile_b).  Activations are transposed so batch is
    # lane-dense; no wrapper-side transpose required.
    h = jnp.tanh(
        lax.dot_general(
            w0_ref[...], x_ref[...],
            dimension_numbers=(((1,), (1,)), ((), ())),
            preferred_element_type=jnp.float32,
        )
        + b0_ref[...]
    )

    # Hidden layers, stacked as (num_hidden, width, width).  num_hidden is
    # static -> fully unroll with static first-axis slices (straight-line
    # chain, no fori_loop / dynamic indexing).
    num_hidden = wh_ref.shape[0]
    for i in range(num_hidden):
        h = jnp.tanh(
            jnp.dot(wh_ref[i], h.astype(wh_ref.dtype),
                    preferred_element_type=jnp.float32)
            + bh_ref[i]
        )

    # Final layer (width -> 1): VPU multiply + cross-sublane reduce instead of
    # a degenerate 1-row MXU matmul.  Output (1, tile_b) is lane-dense.
    o_ref[...] = (
        jnp.sum(wf_ref[...] * h, axis=0, keepdims=True) + bf_ref[0, 0]
    ).astype(o_ref.dtype)


def _choose_tiling(B, *, min_tile=512, max_tile=8192):
    """Pick (tile_b, n_tiles) for the batch axis.

    Small batches -> one straight-line grid step (grid iterations are a serial
    loop on v5e/v6e, ~600 cycles of pure overhead each).  Larger batches ->
    exactly 2 (or a power-of-2 number of) tiles so the "parallel" axis shards
    across v7x's two TensorCores, each tile kept in the 512..8192 lane range.
    """
    b_lanes = pl.cdiv(B, 128)                     # batch in units of 128 lanes
    if b_lanes * 128 <= 2 * min_tile:
        return b_lanes * 128, 1
    n_tiles = 2
    while pl.cdiv(b_lanes, n_tiles) * 128 > max_tile:
        n_tiles *= 2
    tile_b = pl.cdiv(b_lanes, n_tiles) * 128
    return tile_b, pl.cdiv(b_lanes * 128, tile_b)


def net_forward(x, w0, b0, wh, bh, wf, bf, *, compute_dtype=jnp.float32):
    """Pallas forward pass.

    x : (B, num_inputs) f32, native PyTorch input layout (no transpose / pad).
    w0: (width, num_inputs)  b0: (width,)          -- PyTorch (out, in) layout
    wh: (num_hidden, width, width)  bh: (num_hidden, width)
    wf: (1, width)           bf: (1,)
    Returns (B, 1) f32, matching the PyTorch module.
    """
    B, num_inputs = x.shape
    width = w0.shape[0]
    num_hidden = wh.shape[0]

    tile_b, n_tiles = _choose_tiling(B)
    B_pad = tile_b * n_tiles

    # Optional narrowing of streamed/resident matmul operands; accumulation,
    # biases and tanh stay f32.
    x = x.astype(compute_dtype)
    w0 = w0.astype(compute_dtype)
    wh = wh.astype(compute_dtype)
    wf = wf.astype(compute_dtype)

    # Column-vector biases broadcast across the lane (batch) axis in-kernel;
    # final weight as a (width, 1) column for the VPU reduce; final bias as a
    # (1, 1) SMEM scalar.
    b0_col = b0.reshape(width, 1).astype(jnp.float32)
    bh_col = bh.reshape(num_hidden, width, 1).astype(jnp.float32)
    wf_col = wf.reshape(width, 1)
    bf_s = bf.reshape(1, 1).astype(jnp.float32)

    out_t = pl.pallas_call(
        mlp_kernel,
        out_shape=jax.ShapeDtypeStruct((1, B_pad), jnp.float32),
        grid=(n_tiles,),
        in_specs=[
            pl.BlockSpec((tile_b, num_inputs), lambda i: (i, 0)),           # x, native layout
            pl.BlockSpec((width, num_inputs), lambda i: (0, 0)),            # w0 (resident)
            pl.BlockSpec((width, 1), lambda i: (0, 0)),                     # b0
            pl.BlockSpec((num_hidden, width, width), lambda i: (0, 0, 0)),  # wh (resident)
            pl.BlockSpec((num_hidden, width, 1), lambda i: (0, 0, 0)),      # bh
            pl.BlockSpec((width, 1), lambda i: (0, 0)),                     # wf
            pl.BlockSpec(memory_space=pltpu.MemorySpace.SMEM),              # bf scalar
        ],
        out_specs=pl.BlockSpec((1, tile_b), lambda i: (0, i)),
        compiler_params=pltpu.CompilerParams(
            dimension_semantics=("parallel",),  # shards batch tiles on v7x's 2 TCs
        ),
    )(x, w0, b0_col, wh, bh_col, wf_col, bf_s)

    # (1, B_pad) -> (B, 1): slice + axis insert (reshape, no relayout op).
    return out_t[0, :B, None]


def init_params(key, num_inputs, num_layers, width):
    """Deterministic init mimicking PyTorch nn.Linear U(-1/sqrt(fan_in), ...).

    Weights are kept in native PyTorch (out_features, in_features) layout.
    """
    assert num_layers >= 2, "this wrapper stacks hidden layers; use num_layers >= 2"
    keys = jax.random.split(key, 2 * (num_layers + 1))

    def uniform(k, shape, fan_in):
        bound = 1.0 / jnp.sqrt(jnp.float32(fan_in))
        return jax.random.uniform(k, shape, jnp.float32, -bound, bound)

    # Layer 0: num_inputs -> width
    w0 = uniform(keys[0], (width, num_inputs), num_inputs)
    b0 = uniform(keys[1], (width,), num_inputs)

    # Hidden layers 1..num_layers-1: width -> width
    wh_list, bh_list = [], []
    for l in range(1, num_layers):
        wh_list.append(uniform(keys[2 * l], (width, width), width))
        bh_list.append(uniform(keys[2 * l + 1], (width,), width))
    wh = jnp.stack(wh_list, axis=0)                     # (num_hidden, width, width)
    bh = jnp.stack(bh_list, axis=0)                     # (num_hidden, width)

    # Final layer: width -> 1
    wf = uniform(keys[2 * num_layers], (1, width), width)
    bf = uniform(keys[2 * num_layers + 1], (1,), width)

    return w0, b0, wh, bh, wf, bf


def reference_forward(x, w0, b0, wh, bh, wf, bf):
    """Pure-JAX reference matching the PyTorch forward."""
    h = jnp.tanh(x @ w0.T + b0)
    for i in range(wh.shape[0]):
        h = jnp.tanh(h @ wh[i].T + bh[i])
    return h @ wf.T + bf


if __name__ == "__main__":
    # Net(num_inputs=16, num_layers=3, width=32).
    num_inputs, num_layers, width = 16, 3, 32

    key = jax.random.PRNGKey(0)
    k_x, k_p = jax.random.split(key)
    params = init_params(k_p, num_inputs, num_layers, width)

    # Small batch: single straight-line grid step (best on 1-TC v5e/v6e).
    x_small = jax.random.normal(k_x, (256, num_inputs), jnp.float32)
    out = jax.block_until_ready(net_forward(x_small, *params))
    ref = reference_forward(x_small, *params)
    assert out.shape == (256, 1), out.shape
    assert jnp.allclose(out, ref, atol=1e-5, rtol=1e-5), "mismatch vs reference (B=256)"

    # Larger batch: exercises the 2-tile "parallel" grid (one tile per v7x TC).
    x_big = jax.random.normal(k_x, (2048, num_inputs), jnp.float32)
    out_big = jax.block_until_ready(net_forward(x_big, *params))
    ref_big = reference_forward(x_big, *params)
    assert out_big.shape == (2048, 1), out_big.shape
    assert jnp.allclose(out_big, ref_big, atol=1e-5, rtol=1e-5), "mismatch vs reference (B=2048)"

    # bf16-streamed variant (halves input HBM traffic; f32 accumulation/tanh).
    out_bf16 = jax.block_until_ready(
        net_forward(x_small, *params, compute_dtype=jnp.bfloat16))
    assert jnp.allclose(out_bf16, ref, atol=1e-1, rtol=1e-1), "bf16 path too far off"

    print("KERNEL_OK")
</pallas_src>

<mosaic_0001>
module attributes {stable_mosaic.version = 11 : i64} {
  func.func @mlp_kernel(%arg0: i32, %arg1: memref<256x16xf32, #tpu.memory_space<vmem>>, %arg2: memref<32x16xf32, #tpu.memory_space<vmem>>, %arg3: memref<32x1xf32, #tpu.memory_space<vmem>>, %arg4: memref<2x32x32xf32, #tpu.memory_space<vmem>>, %arg5: memref<2x32x1xf32, #tpu.memory_space<vmem>>, %arg6: memref<32x1xf32, #tpu.memory_space<vmem>>, %arg7: memref<1x1xf32, #tpu.memory_space<smem>>, %arg8: memref<1x256xf32, #tpu.memory_space<vmem>>) attributes {dimension_semantics = [#tpu.dimension_semantics<parallel>], iteration_bounds = array<i64: 1>, scalar_prefetch = 0 : i64, scratch_operands = 0 : i64, tpu.core_type = #tpu.core_type<tc>, window_params = [{transform_indices = @transform_0, window_bounds = array<i64: 256, 16>}, {pipeline_mode = #tpu.pipeline_mode<synchronous>, transform_indices = @transform_1, window_bounds = array<i64: 32, 16>}, {pipeline_mode = #tpu.pipeline_mode<synchronous>, transform_indices = @transform_2, window_bounds = array<i64: 32, 1>}, {pipeline_mode = #tpu.pipeline_mode<synchronous>, transform_indices = @transform_3, window_bounds = array<i64: 2, 32, 32>}, {pipeline_mode = #tpu.pipeline_mode<synchronous>, transform_indices = @transform_4, window_bounds = array<i64: 2, 32, 1>}, {pipeline_mode = #tpu.pipeline_mode<synchronous>, transform_indices = @transform_5, window_bounds = array<i64: 32, 1>}, {transform_indices = @transform_6, window_bounds = array<i64: 1, 1>}, {transform_indices = @transform_7, window_bounds = array<i64: 1, 256>}]} {
    %c0 = arith.constant 0 : index
    %c0_0 = arith.constant 0 : index
    %0 = vector.load %arg2[%c0, %c0_0] : memref<32x16xf32, #tpu.memory_space<vmem>>, vector<32x16xf32>
    %c0_1 = arith.constant 0 : index
    %c0_2 = arith.constant 0 : index
    %1 = vector.load %arg1[%c0_1, %c0_2] : memref<256x16xf32, #tpu.memory_space<vmem>>, vector<256x16xf32>
    %cst = arith.constant dense<0.000000e+00> : vector<32x256xf32>
    %2 = tpu.matmul %0, %1, %cst {dimension_numbers = #tpu.dot_dimension_numbers<[1], [1], [0], [0], [0, 0, 1, 0], [], []>} : vector<32x16xf32>, vector<256x16xf32>, vector<32x256xf32> -> vector<32x256xf32>
    %c0_3 = arith.constant 0 : index
    %c0_4 = arith.constant 0 : index
    %3 = vector.load %arg3[%c0_3, %c0_4] : memref<32x1xf32, #tpu.memory_space<vmem>>, vector<32x1xf32>
    %4 = vector.broadcast %3 : vector<32x1xf32> to vector<32x256xf32>
    %5 = arith.addf %2, %4 : vector<32x256xf32>
    %6 = math.tanh %5 : vector<32x256xf32>
    %c0_5 = arith.constant 0 : index
    %c0_6 = arith.constant 0 : index
    %c0_7 = arith.constant 0 : index
    %7 = vector.load %arg4[%c0_5, %c0_6, %c0_7] : memref<2x32x32xf32, #tpu.memory_space<vmem>>, vector<1x32x32xf32>
    %8 = vector.shape_cast %7 : vector<1x32x32xf32> to vector<32x32xf32>
    %cst_8 = arith.constant dense<0.000000e+00> : vector<32x256xf32>
    %9 = tpu.matmul %8, %6, %cst_8 {dimension_numbers = #tpu.dot_dimension_numbers<[1], [0], [0], [1], [0, 0, 1, 1], [], []>} : vector<32x32xf32>, vector<32x256xf32>, vector<32x256xf32> -> vector<32x256xf32>
    %c0_9 = arith.constant 0 : index
    %c0_10 = arith.constant 0 : index
    %c0_11 = arith.constant 0 : index
    %10 = vector.load %arg5[%c0_9, %c0_10, %c0_11] : memref<2x32x1xf32, #tpu.memory_space<vmem>>, vector<1x32x1xf32>
    %11 = vector.shape_cast %10 : vector<1x32x1xf32> to vector<32x1xf32>
    %12 = vector.broadcast %11 : vector<32x1xf32> to vector<32x256xf32>
    %13 = arith.addf %9, %12 : vector<32x256xf32>
    %14 = math.tanh %13 : vector<32x256xf32>
    %c1 = arith.constant 1 : index
    %c0_12 = arith.constant 0 : index
    %c0_13 = arith.constant 0 : index
    %15 = vector.load %arg4[%c1, %c0_12, %c0_13] : memref<2x32x32xf32, #tpu.memory_space<vmem>>, vector<1x32x32xf32>
    %16 = vector.shape_cast %15 : vector<1x32x32xf32> to vector<32x32xf32>
    %cst_14 = arith.constant dense<0.000000e+00> : vector<32x256xf32>
    %17 = tpu.matmul %16, %14, %cst_14 {dimension_numbers = #tpu.dot_dimension_numbers<[1], [0], [0], [1], [0, 0, 1, 1], [], []>} : vector<32x32xf32>, vector<32x256xf32>, vector<32x256xf32> -> vector<32x256xf32>
    %c1_15 = arith.constant 1 : index
    %c0_16 = arith.constant 0 : index
    %c0_17 = arith.constant 0 : index
    %18 = vector.load %arg5[%c1_15, %c0_16, %c0_17] : memref<2x32x1xf32, #tpu.memory_space<vmem>>, vector<1x32x1xf32>
    %19 = vector.shape_cast %18 : vector<1x32x1xf32> to vector<32x1xf32>
    %20 = vector.broadcast %19 : vector<32x1xf32> to vector<32x256xf32>
    %21 = arith.addf %17, %20 : vector<32x256xf32>
    %22 = math.tanh %21 : vector<32x256xf32>
    %c0_18 = arith.constant 0 : index
    %c0_19 = arith.constant 0 : index
    %23 = vector.load %arg6[%c0_18, %c0_19] : memref<32x1xf32, #tpu.memory_space<vmem>>, vector<32x1xf32>
    %24 = vector.broadcast %23 : vector<32x1xf32> to vector<32x256xf32>
    %25 = arith.mulf %24, %22 : vector<32x256xf32>
    %cst_20 = arith.constant dense<0.000000e+00> : vector<256xf32>
    %26 = vector.multi_reduction <add>, %25, %cst_20 [0] : vector<32x256xf32> to vector<256xf32>
    %27 = vector.shape_cast %26 : vector<256xf32> to vector<1x256xf32>
    %c0_21 = arith.constant 0 : index
    %c0_22 = arith.constant 0 : index
    %28 = memref.load %arg7[%c0_21, %c0_22] : memref<1x1xf32, #tpu.memory_space<smem>>
    %29 = vector.broadcast %28 : f32 to vector<1x256xf32>
    %30 = arith.addf %27, %29 : vector<1x256xf32>
    %c0_23 = arith.constant 0 : index
    %c0_24 = arith.constant 0 : index
    %31 = vector.load %arg8[%c0_23, %c0_24] : memref<1x256xf32, #tpu.memory_space<vmem>>, vector<1x256xf32>
    tpu.vector_store %arg8[%c0_23, %c0_24], %30 {strides = array<i32>} : memref<1x256xf32, #tpu.memory_space<vmem>>, vector<1x256xf32>,
    return
  }
  func.func @transform_0(%arg0: i32) -> (i32, i32) {
    %c0_i32 = arith.constant 0 : i32
    %c0_i32_0 = arith.constant 0 : i32
    return %arg0, %c0_i32 : i32, i32
  }
  func.func @transform_1(%arg0: i32) -> (i32, i32) {
    %c0_i32 = arith.constant 0 : i32
    %c0_i32_0 = arith.constant 0 : i32
    %c0_i32_1 = arith.constant 0 : i32
    return %c0_i32, %c0_i32_0 : i32, i32
  }
  func.func @transform_2(%arg0: i32) -> (i32, i32) {
    %c0_i32 = arith.constant 0 : i32
    %c0_i32_0 = arith.constant 0 : i32
    %c0_i32_1 = arith.constant 0 : i32
    return %c0_i32, %c0_i32_0 : i32, i32
  }
  func.func @transform_3(%arg0: i32) -> (i32, i32, i32) {
    %c0_i32 = arith.constant 0 : i32
    %c0_i32_0 = arith.constant 0 : i32
    %c0_i32_1 = arith.constant 0 : i32
    %c0_i32_2 = arith.constant 0 : i32
    return %c0_i32, %c0_i32_0, %c0_i32_1 : i32, i32, i32
  }
  func.func @transform_4(%arg0: i32) -> (i32, i32, i32) {
    %c0_i32 = arith.constant 0 : i32
    %c0_i32_0 = arith.constant 0 : i32
    %c0_i32_1 = arith.constant 0 : i32
    %c0_i32_2 = arith.constant 0 : i32
    return %c0_i32, %c0_i32_0, %c0_i32_1 : i32, i32, i32
  }
  func.func @transform_5(%arg0: i32) -> (i32, i32) {
    %c0_i32 = arith.constant 0 : i32
    %c0_i32_0 = arith.constant 0 : i32
    %c0_i32_1 = arith.constant 0 : i32
    return %c0_i32, %c0_i32_0 : i32, i32
  }
  func.func @transform_6(%arg0: i32) -> (i32, i32) {
    %c0_i32 = arith.constant 0 : i32
    %c0_i32_0 = arith.constant 0 : i32
    %c0_i32_1 = arith.constant 0 : i32
    return %c0_i32, %c0_i32_0 : i32, i32
  }
  func.func @transform_7(%arg0: i32) -> (i32, i32) {
    %c0_i32 = arith.constant 0 : i32
    %c0_i32_0 = arith.constant 0 : i32
    return %c0_i32, %arg0 : i32, i32
  }
}

</mosaic_0001>

<llo_original>
// kernel: tpu_custom_call.1
$region0: #{tpu_custom_call.1}
  #allocation0 [shape = 'u32[]', space=smem, size = 0x4, offset = 0x4, fixed_abs, tag = 'smem constant byte address 0x4 - core index']
  #allocation1 [shape = 'u32[72,128]{1,0:T(1,128)}', space=vmem, size = 0x9000, scoped, tag = 'internal scratch']
  #allocation2 [shape = 'f32[1,1]{1,0:T(1,128)S(6)}', space=smem, size = 0x200, scoped, tag = 'scoped memory for tpu_custom_call.1']
  %s0 = inlined_call_operand.vmem [shape: f32[256,16], index: 0, kind: input, shape index: {}]
  %s1 = inlined_call_operand.vmem [shape: f32[32,16], index: 1, kind: input, shape index: {}]
  %s2 = inlined_call_operand.vmem [shape: f32[32,1], index: 2, kind: input, shape index: {}]
  %s3 = inlined_call_operand.vmem [shape: f32[2,32,32], index: 3, kind: input, shape index: {}]
  %s4 = inlined_call_operand.vmem [shape: f32[2,32,1], index: 4, kind: input, shape index: {}]
  %s5 = inlined_call_operand.vmem [shape: f32[32,1], index: 5, kind: input, shape index: {}]
  %s6 = inlined_call_operand.<no memory space> [shape: f32[1,1], index: 6, kind: input, shape index: {}]
  %s7 = inlined_call_operand.hbm [shape: f32[1,256], index: 7, kind: output, shape index: {}]
  %s8 = sld [smem:[#allocation0]]
  $region38: #{tpu_custom_call.1} parent=0
    _
  %s10 = ssub.s32 1, %s8
  %s11 = scalar_select 0, %s10, %s8
  %12 = sst [smem:[#allocation2]] %s6
  $region1: #{tpu_custom_call.1} parent=0
    #allocation3 [shape = 'u8[1024]{0}', space=vmem, size = 0x400, scoped, tag = 'output window, operand 0, single buffered']
    #allocation4 [shape = 's32[1]{0}', space=sflag, size = 0x4, scoped, tag = 'scoped memory for tpu_custom_call.1']
    %13 = vsyncpa [#allocation4], 0
    // Predicated region
    $region2: #{tpu_custom_call.1} parent=1 // pred_check
      _
    $region3: #{tpu_custom_call.1} parent=1 // pred_check_branch
      %15 = sbr.rel (0) target = $region5
    $region4: #{tpu_custom_call.1} parent=1 // pred_region
      _
    $region5: #{tpu_custom_call.1} parent=1 // pred_fallthru
      _
    // Predicated region
    $region6: #{tpu_custom_call.1} parent=1 // pred_check
      _
    $region7: #{tpu_custom_call.1} parent=1 // pred_check_branch
      %17 = sbr.rel (0) target = $region9
    $region8: #{tpu_custom_call.1} parent=1 // pred_region
      _
    $region9: #{tpu_custom_call.1} parent=1 // pred_fallthru
      _
    // Predicated region
    $region10: #{tpu_custom_call.1} parent=1 // pred_check
      _
    $region11: #{tpu_custom_call.1} parent=1 // pred_check_branch
      %19 = sbr.rel (0) target = $region13
    $region12: #{tpu_custom_call.1} parent=1 // pred_region
      _
    $region13: #{tpu_custom_call.1} parent=1 // pred_fallthru
      _
    // Predicated region
    $region14: #{tpu_custom_call.1} parent=1 // pred_check
      _
    $region15: #{tpu_custom_call.1} parent=1 // pred_check_branch
      %21 = sbr.rel (0) target = $region17
    $region16: #{tpu_custom_call.1} parent=1 // pred_region
      _
    $region17: #{tpu_custom_call.1} parent=1 // pred_fallthru
      _
    // Predicated region
    $region18: #{tpu_custom_call.1} parent=1 // pred_check
      _
    $region19: #{tpu_custom_call.1} parent=1 // pred_check_branch
      %23 = sbr.rel (0) target = $region21
    $region20: #{tpu_custom_call.1} parent=1 // pred_region
      _
    $region21: #{tpu_custom_call.1} parent=1 // pred_fallthru
      _
    // Predicated region
    $region22: #{tpu_custom_call.1} parent=1 // pred_check
      _
    $region23: #{tpu_custom_call.1} parent=1 // pred_check_branch
      %25 = sbr.rel (0) target = $region25
    $region24: #{tpu_custom_call.1} parent=1 // pred_region
      _
    $region25: #{tpu_custom_call.1} parent=1 // pred_fallthru
      _
    // Predicated region
    $region26: #{tpu_custom_call.1} parent=1 // pred_check
      _
    $region27: #{tpu_custom_call.1} parent=1 // pred_check_branch
      %27 = sbr.rel (0) target = $region29
    $region28: #{tpu_custom_call.1} parent=1 // pred_region
      _
    $region29: #{tpu_custom_call.1} parent=1 // pred_fallthru
      _
    %v28 = vld [vmem:[%s1] sm:$0xff]
    %v29 = vld [vmem:[%s1 + $0x8] sm:$0xff]
    %v30 = vld [vmem:[%s1 + $0x10] sm:$0xff]
    %v31 = vld [vmem:[%s1 + $0x18] sm:$0xff]
    %v32 = vld [vmem:[%s0] sm:$0xff]
    %v33 = vld [vmem:[%s0 + $0x8] sm:$0xff]
    %v34 = vld [vmem:[%s0 + $0x10] sm:$0xff]
    %v35 = vld [vmem:[%s0 + $0x18] sm:$0xff]
    %v36 = vld [vmem:[%s0 + $0x20] sm:$0xff]
    %v37 = vld [vmem:[%s0 + $0x28] sm:$0xff]
    %v38 = vld [vmem:[%s0 + $0x30] sm:$0xff]
    %v39 = vld [vmem:[%s0 + $0x38] sm:$0xff]
    %v40 = vld [vmem:[%s0 + $0x40] sm:$0xff]
    %v41 = vld [vmem:[%s0 + $0x48] sm:$0xff]
    %v42 = vld [vmem:[%s0 + $0x50] sm:$0xff]
    %v43 = vld [vmem:[%s0 + $0x58] sm:$0xff]
    %v44 = vld [vmem:[%s0 + $0x60] sm:$0xff]
    %v45 = vld [vmem:[%s0 + $0x68] sm:$0xff]
    %v46 = vld [vmem:[%s0 + $0x70] sm:$0xff]
    %v47 = vld [vmem:[%s0 + $0x78] sm:$0xff]
    %v48 = vld [vmem:[%s0 + $0x80] sm:$0xff]
    %v49 = vld [vmem:[%s0 + $0x88] sm:$0xff]
    %v50 = vld [vmem:[%s0 + $0x90] sm:$0xff]
    %v51 = vld [vmem:[%s0 + $0x98] sm:$0xff]
    %v52 = vld [vmem:[%s0 + $0xa0] sm:$0xff]
    %v53 = vld [vmem:[%s0 + $0xa8] sm:$0xff]
    %v54 = vld [vmem:[%s0 + $0xb0] sm:$0xff]
    %v55 = vld [vmem:[%s0 + $0xb8] sm:$0xff]
    %v56 = vld [vmem:[%s0 + $0xc0] sm:$0xff]
    %v57 = vld [vmem:[%s0 + $0xc8] sm:$0xff]
    %v58 = vld [vmem:[%s0 + $0xd0] sm:$0xff]
    %v59 = vld [vmem:[%s0 + $0xd8] sm:$0xff]
    %v60 = vld [vmem:[%s0 + $0xe0] sm:$0xff]
    %v61 = vld [vmem:[%s0 + $0xe8] sm:$0xff]
    %v62 = vld [vmem:[%s0 + $0xf0] sm:$0xff]
    %v63 = vld [vmem:[%s0 + $0xf8] sm:$0xff]
    %v64 = vld [vmem:[%s2] sm:$0xff]
    %v65 = vld [vmem:[%s2 + $0x8] sm:$0xff]
    %v66 = vld [vmem:[%s2 + $0x10] sm:$0xff]
    %v67 = vld [vmem:[%s2 + $0x18] sm:$0xff]
    %69 = vset.pattern.permute.xlu0 0
    %70 = vperm.xlu0 %69, %v64
    %v71 = vpop.permute.xlu0 %70
    %74 = vset.pattern.permute.xlu0 0
    %75 = vperm.xlu0 %74, %v65
    %v76 = vpop.permute.xlu0 %75
    %79 = vset.pattern.permute.xlu0 0
    %80 = vperm.xlu0 %79, %v66
    %v81 = vpop.permute.xlu0 %80
    %84 = vset.pattern.permute.xlu0 0
    %85 = vperm.xlu0 %84, %v67
    %v86 = vpop.permute.xlu0 %85
    %vm88 = vcmask 130048
    %v90 = vsel %vm88, %v28, 0
    %v93 = vsel %vm88, %v29, 0
    %v96 = vsel %vm88, %v30, 0
    %v99 = vsel %vm88, %v31, 0
    %v102 = vsel %vm88, %v32, 0
    %v105 = vsel %vm88, %v33, 0
    %v108 = vsel %vm88, %v34, 0
    %v111 = vsel %vm88, %v35, 0
    %v114 = vsel %vm88, %v36, 0
    %v117 = vsel %vm88, %v37, 0
    %v120 = vsel %vm88, %v38, 0
    %v123 = vsel %vm88, %v39, 0
    %v126 = vsel %vm88, %v40, 0
    %v129 = vsel %vm88, %v41, 0
    %v132 = vsel %vm88, %v42, 0
    %v135 = vsel %vm88, %v43, 0
    %v138 = vsel %vm88, %v44, 0
    %v141 = vsel %vm88, %v45, 0
    %v144 = vsel %vm88, %v46, 0
    %v147 = vsel %vm88, %v47, 0
    %v150 = vsel %vm88, %v48, 0
    %v153 = vsel %vm88, %v49, 0
    %v156 = vsel %vm88, %v50, 0
    %v159 = vsel %vm88, %v51, 0
    %v162 = vsel %vm88, %v52, 0
    %v165 = vsel %vm88, %v53, 0
    %v168 = vsel %vm88, %v54, 0
    %v171 = vsel %vm88, %v55, 0
    %v174 = vsel %vm88, %v56, 0
    %v177 = vsel %vm88, %v57, 0
    %v180 = vsel %vm88, %v58, 0
    %v183 = vsel %vm88, %v59, 0
    %v186 = vsel %vm88, %v60, 0
    %v189 = vsel %vm88, %v61, 0
    %v192 = vsel %vm88, %v62, 0
    %v195 = vsel %vm88, %v63, 0
    %197 = vmatpush.xpose.msra.mxu0 %v147
    %198 = vmatpush.xpose.msra.mxu0 %v144
    %199 = vmatpush.xpose.msra.mxu0 %v141
    %200 = vmatpush.xpose.msra.mxu0 %v138
    %201 = vmatpush.xpose.msra.mxu0 %v135
    %202 = vmatpush.xpose.msra.mxu0 %v132
    %203 = vmatpush.xpose.msra.mxu0 %v129
    %204 = vmatpush.xpose.msra.mxu0 %v126
    %205 = vmatpush.xpose.msra.mxu0 %v123
    %206 = vmatpush.xpose.msra.mxu0 %v120
    %207 = vmatpush.xpose.msra.mxu0 %v117
    %208 = vmatpush.xpose.msra.mxu0 %v114
    %209 = vmatpush.xpose.msra.mxu0 %v111
    %210 = vmatpush.xpose.msra.mxu0 %v108
    %211 = vmatpush.xpose.msra.mxu0 %v105
    %212 = vmatpush.xpose.msra.mxu0 %v102
    %213 = vmatmul.f32.gmra.mxu0 %v90
    %v214 = vpop.f32.mrf.mxu0
    %v215 = vadd.f32 %v71, %v214
    %216 = vmatmul.f32.gmra.mxu0 %v93
    %v217 = vpop.f32.mrf.mxu0
    %v218 = vadd.f32 %v76, %v217
    %219 = vmatmul.f32.gmra.mxu0 %v96
    %v220 = vpop.f32.mrf.mxu0
    %v221 = vadd.f32 %v81, %v220
    %222 = vmatmul.f32.gmra.mxu0 %v99
    %v223 = vpop.f32.mrf.mxu0
    %v224 = vadd.f32 %v86, %v223
    %225 = vdwg.mxu0
    %226 = vmatpush.xpose.msra.mxu0 %v195
    %227 = vmatpush.xpose.msra.mxu0 %v192
    %228 = vmatpush.xpose.msra.mxu0 %v189
    %229 = vmatpush.xpose.msra.mxu0 %v186
    %230 = vmatpush.xpose.msra.mxu0 %v183
    %231 = vmatpush.xpose.msra.mxu0 %v180
    %232 = vmatpush.xpose.msra.mxu0 %v177
    %233 = vmatpush.xpose.msra.mxu0 %v174
    %234 = vmatpush.xpose.msra.mxu0 %v171
    %235 = vmatpush.xpose.msra.mxu0 %v168
    %236 = vmatpush.xpose.msra.mxu0 %v165
    %237 = vmatpush.xpose.msra.mxu0 %v162
    %238 = vmatpush.xpose.msra.mxu0 %v159
    %239 = vmatpush.xpose.msra.mxu0 %v156
    %240 = vmatpush.xpose.msra.mxu0 %v153
    %241 = vmatpush.xpose.msra.mxu0 %v150
    %242 = vmatmul.f32.gmra.mxu0 %v90
    %v243 = vpop.f32.mrf.mxu0
    %v244 = vadd.f32 %v71, %v243
    %245 = vmatmul.f32.gmra.mxu0 %v93
    %v246 = vpop.f32.mrf.mxu0
    %v247 = vadd.f32 %v76, %v246
    %248 = vmatmul.f32.gmra.mxu0 %v96
    %v249 = vpop.f32.mrf.mxu0
    %v250 = vadd.f32 %v81, %v249
    %251 = vmatmul.f32.gmra.mxu0 %v99
    %v252 = vpop.f32.mrf.mxu0
    %v253 = vadd.f32 %v86, %v252
    %254 = vdwg.mxu0
    %v255 = vtanh.pop %v215
    %v256 = vtanh.pop %v244
    %v257 = vtanh.pop %v218
    %v258 = vtanh.pop %v247
    %v259 = vtanh.pop %v221
    %v260 = vtanh.pop %v250
    %v261 = vtanh.pop %v224
    %v262 = vtanh.pop %v253
    %v263 = vld [vmem:[%s3] sm:$0xff]
    %v264 = vld [vmem:[%s3 + $0x8] sm:$0xff]
    %v265 = vld [vmem:[%s3 + $0x10] sm:$0xff]
    %v266 = vld [vmem:[%s3 + $0x18] sm:$0xff]
    %v267 = vld [vmem:[%s4] sm:$0xff]
    %v268 = vld [vmem:[%s4 + $0x8] sm:$0xff]
    %v269 = vld [vmem:[%s4 + $0x10] sm:$0xff]
    %v270 = vld [vmem:[%s4 + $0x18] sm:$0xff]
    %272 = vset.pattern.permute.xlu0 0
    %273 = vperm.xlu0 %272, %v267
    %v274 = vpop.permute.xlu0 %273
    %277 = vset.pattern.permute.xlu0 0
    %278 = vperm.xlu0 %277, %v268
    %v279 = vpop.permute.xlu0 %278
    %282 = vset.pattern.permute.xlu0 0
    %283 = vperm.xlu0 %282, %v269
    %v284 = vpop.permute.xlu0 %283
    %287 = vset.pattern.permute.xlu0 0
    %288 = vperm.xlu0 %287, %v270
    %v289 = vpop.permute.xlu0 %288
    %vm291 = vcmask 261120
    %v293 = vsel %vm291, %v263, 0
    %v296 = vsel %vm291, %v264, 0
    %v299 = vsel %vm291, %v265, 0
    %v302 = vsel %vm291, %v266, 0
    %304 = vmatpush.msra.mxu0 0.0
    %305 = vmatpush.msra.mxu0 0.0
    %306 = vmatpush.msra.mxu0 0.0
    %307 = vmatpush.msra.mxu0 0.0
    %308 = vmatpush.msra.mxu0 0.0
    %309 = vmatpush.msra.mxu0 0.0
    %310 = vmatpush.msra.mxu0 0.0
    %311 = vmatpush.msra.mxu0 0.0
    %312 = vmatpush.msra.mxu0 0.0
    %313 = vmatpush.msra.mxu0 0.0
    %314 = vmatpush.msra.mxu0 0.0
    %315 = vmatpush.msra.mxu0 0.0
    %316 = vmatpush.msra.mxu0 %v261
    %317 = vmatpush.msra.mxu0 %v259
    %318 = vmatpush.msra.mxu0 %v257
    %319 = vmatpush.msra.mxu0 %v255
    %320 = vmatmul.f32.gmra.mxu0 %v293
    %v321 = vpop.f32.mrf.mxu0
    %v322 = vadd.f32 %v274, %v321
    %323 = vmatmul.f32.gmra.mxu0 %v296
    %v324 = vpop.f32.mrf.mxu0
    %v325 = vadd.f32 %v279, %v324
    %326 = vmatmul.f32.gmra.mxu0 %v299
    %v327 = vpop.f32.mrf.mxu0
    %v328 = vadd.f32 %v284, %v327
    %329 = vmatmul.f32.gmra.mxu0 %v302
    %v330 = vpop.f32.mrf.mxu0
    %v331 = vadd.f32 %v289, %v330
    %332 = vdwg.mxu0
    %333 = vmatpush.msra.mxu0 0.0
    %334 = vmatpush.msra.mxu0 0.0
    %335 = vmatpush.msra.mxu0 0.0
    %336 = vmatpush.msra.mxu0 0.0
    %337 = vmatpush.msra.mxu0 0.0
    %338 = vmatpush.msra.mxu0 0.0
    %339 = vmatpush.msra.mxu0 0.0
    %340 = vmatpush.msra.mxu0 0.0
    %341 = vmatpush.msra.mxu0 0.0
    %342 = vmatpush.msra.mxu0 0.0
    %343 = vmatpush.msra.mxu0 0.0
    %344 = vmatpush.msra.mxu0 0.0
    %345 = vmatpush.msra.mxu0 %v262
    %346 = vmatpush.msra.mxu0 %v260
    %347 = vmatpush.msra.mxu0 %v258
    %348 = vmatpush.msra.mxu0 %v256
    %349 = vmatmul.f32.gmra.mxu0 %v293
    %v350 = vpop.f32.mrf.mxu0
    %v351 = vadd.f32 %v274, %v350
    %352 = vmatmul.f32.gmra.mxu0 %v296
    %v353 = vpop.f32.mrf.mxu0
    %v354 = vadd.f32 %v279, %v353
    %355 = vmatmul.f32.gmra.mxu0 %v299
    %v356 = vpop.f32.mrf.mxu0
    %v357 = vadd.f32 %v284, %v356
    %358 = vmatmul.f32.gmra.mxu0 %v302
    %v359 = vpop.f32.mrf.mxu0
    %v360 = vadd.f32 %v289, %v359
    %361 = vdwg.mxu0
    %v362 = vtanh.pop %v322
    %v363 = vtanh.pop %v351
    %v364 = vtanh.pop %v325
    %v365 = vtanh.pop %v354
    %v366 = vtanh.pop %v328
    %v367 = vtanh.pop %v357
    %v368 = vtanh.pop %v331
    %v369 = vtanh.pop %v360
    %s370 = scalar_lea.vmem %s3, 32
    %v371 = vld [vmem:[%s370] sm:$0xff]
    %v372 = vld [vmem:[%s370 + $0x8] sm:$0xff]
    %v373 = vld [vmem:[%s370 + $0x10] sm:$0xff]
    %v374 = vld [vmem:[%s370 + $0x18] sm:$0xff]
    %s375 = scalar_lea.vmem %s4, 32
    %v376 = vld [vmem:[%s375] sm:$0xff]
    %v377 = vld [vmem:[%s375 + $0x8] sm:$0xff]
    %v378 = vld [vmem:[%s375 + $0x10] sm:$0xff]
    %v379 = vld [vmem:[%s375 + $0x18] sm:$0xff]
    %381 = vset.pattern.permute.xlu0 0
    %382 = vperm.xlu0 %381, %v376
    %v383 = vpop.permute.xlu0 %382
    %386 = vset.pattern.permute.xlu0 0
    %387 = vperm.xlu0 %386, %v377
    %v388 = vpop.permute.xlu0 %387
    %391 = vset.pattern.permute.xlu0 0
    %392 = vperm.xlu0 %391, %v378
    %v393 = vpop.permute.xlu0 %392
    %396 = vset.pattern.permute.xlu0 0
    %397 = vperm.xlu0 %396, %v379
    %v398 = vpop.permute.xlu0 %397
    %v401 = vsel %vm291, %v371, 0
    %v404 = vsel %vm291, %v372, 0
    %v407 = vsel %vm291, %v373, 0
    %v410 = vsel %vm291, %v374, 0
    %412 = vmatpush.msra.mxu0 0.0
    %413 = vmatpush.msra.mxu0 0.0
    %414 = vmatpush.msra.mxu0 0.0
    %415 = vmatpush.msra.mxu0 0.0
    %416 = vmatpush.msra.mxu0 0.0
    %417 = vmatpush.msra.mxu0 0.0
    %418 = vmatpush.msra.mxu0 0.0
    %419 = vmatpush.msra.mxu0 0.0
    %420 = vmatpush.msra.mxu0 0.0
    %421 = vmatpush.msra.mxu0 0.0
    %422 = vmatpush.msra.mxu0 0.0
    %423 = vmatpush.msra.mxu0 0.0
    %424 = vmatpush.msra.mxu0 %v368
    %425 = vmatpush.msra.mxu0 %v366
    %426 = vmatpush.msra.mxu0 %v364
    %427 = vmatpush.msra.mxu0 %v362
    %428 = vmatmul.f32.gmra.mxu0 %v401
    %v429 = vpop.f32.mrf.mxu0
    %v430 = vadd.f32 %v383, %v429
    %431 = vmatmul.f32.gmra.mxu0 %v404
    %v432 = vpop.f32.mrf.mxu0
    %v433 = vadd.f32 %v388, %v432
    %434 = vmatmul.f32.gmra.mxu0 %v407
    %v435 = vpop.f32.mrf.mxu0
    %v436 = vadd.f32 %v393, %v435
    %437 = vmatmul.f32.gmra.mxu0 %v410
    %v438 = vpop.f32.mrf.mxu0
    %v439 = vadd.f32 %v398, %v438
    %440 = vdwg.mxu0
    %441 = vmatpush.msra.mxu0 0.0
    %442 = vmatpush.msra.mxu0 0.0
    %443 = vmatpush.msra.mxu0 0.0
    %444 = vmatpush.msra.mxu0 0.0
    %445 = vmatpush.msra.mxu0 0.0
    %446 = vmatpush.msra.mxu0 0.0
    %447 = vmatpush.msra.mxu0 0.0
    %448 = vmatpush.msra.mxu0 0.0
    %449 = vmatpush.msra.mxu0 0.0
    %450 = vmatpush.msra.mxu0 0.0
    %451 = vmatpush.msra.mxu0 0.0
    %452 = vmatpush.msra.mxu0 0.0
    %453 = vmatpush.msra.mxu0 %v369
    %454 = vmatpush.msra.mxu0 %v367
    %455 = vmatpush.msra.mxu0 %v365
    %456 = vmatpush.msra.mxu0 %v363
    %457 = vmatmul.f32.gmra.mxu0 %v401
    %v458 = vpop.f32.mrf.mxu0
    %v459 = vadd.f32 %v383, %v458
    %460 = vmatmul.f32.gmra.mxu0 %v404
    %v461 = vpop.f32.mrf.mxu0
    %v462 = vadd.f32 %v388, %v461
    %463 = vmatmul.f32.gmra.mxu0 %v407
    %v464 = vpop.f32.mrf.mxu0
    %v465 = vadd.f32 %v393, %v464
    %466 = vmatmul.f32.gmra.mxu0 %v410
    %v467 = vpop.f32.mrf.mxu0
    %v468 = vadd.f32 %v398, %v467
    %469 = vdwg.mxu0
    %v470 = vtanh.pop %v430
    %v471 = vtanh.pop %v459
    %v472 = vtanh.pop %v433
    %v473 = vtanh.pop %v462
    %v474 = vtanh.pop %v436
    %v475 = vtanh.pop %v465
    %v476 = vtanh.pop %v439
    %v477 = vtanh.pop %v468
    %v478 = vld [vmem:[%s5] sm:$0xff]
    %v479 = vld [vmem:[%s5 + $0x8] sm:$0xff]
    %v480 = vld [vmem:[%s5 + $0x10] sm:$0xff]
    %v481 = vld [vmem:[%s5 + $0x18] sm:$0xff]
    %483 = vset.pattern.permute.xlu0 0
    %484 = vperm.xlu0 %483, %v478
    %v485 = vpop.permute.xlu0 %484
    %488 = vset.pattern.permute.xlu0 0
    %489 = vperm.xlu0 %488, %v479
    %v490 = vpop.permute.xlu0 %489
    %493 = vset.pattern.permute.xlu0 0
    %494 = vperm.xlu0 %493, %v480
    %v495 = vpop.permute.xlu0 %494
    %498 = vset.pattern.permute.xlu0 0
    %499 = vperm.xlu0 %498, %v481
    %v500 = vpop.permute.xlu0 %499
    %v502 = vmul.f32 %v485, %v470
    %v503 = vmul.f32 %v485, %v471
    %v504 = vmul.f32 %v490, %v472
    %v505 = vmul.f32 %v490, %v473
    %v506 = vmul.f32 %v495, %v474
    %v507 = vmul.f32 %v495, %v475
    %v508 = vmul.f32 %v500, %v476
    %v509 = vmul.f32 %v500, %v477
    %v510 = vadd.f32 %v502, %v504
    %v511 = vadd.f32 %v510, %v506
    %v512 = vadd.f32 %v511, %v508
    %v513 = vrot.slane %v512, 4
    %v514 = vadd.f32 %v512, %v513
    %v515 = vrot.slane %v514, 2
    %v516 = vadd.f32 %v514, %v515
    %v517 = vrot.slane %v516, 1
    %v518 = vadd.f32 %v516, %v517
    %v519 = vadd.f32 %v503, %v505
    %v520 = vadd.f32 %v519, %v507
    %v521 = vadd.f32 %v520, %v509
    %v522 = vrot.slane %v521, 4
    %v523 = vadd.f32 %v521, %v522
    %v524 = vrot.slane %v523, 2
    %v525 = vadd.f32 %v523, %v524
    %v526 = vrot.slane %v525, 1
    %v527 = vadd.f32 %v525, %v526
    %s528 = sld [smem:[#allocation2]]
    %v529 = vstv %s528
    %v530 = vadd.f32 %v518, %v529
    %v531 = vadd.f32 %v527, %v529
    %v534 = vrot.slane %v531, 7
    %vm535 = vcmask 1040384
    %v536 = vsel %vm535, %v530, %v534
    %v538 = vlaneseq
    %vm539 = vcmp.ge.s32.totalorder %v538, 0
    %vm540 = vcmp.lt.s32.totalorder %v538, 256
    %vm541 = vmand %vm539, %vm540
    %542 = vst.msk [vmem:[#allocation3] sm:$0x3] %vm541, %v536
    // Predicated region
    $region30: #{tpu_custom_call.1} parent=1 // pred_check
      _
    $region31: #{tpu_custom_call.1} parent=1 // pred_check_branch
      %544 = sbr.rel (0) target = $region33
    $region32: #{tpu_custom_call.1} parent=1 // pred_region
      %546 = vsyncadd [#allocation4], 0
      %s548 = sshll.u32 [#allocation3], 4
      %s549 = int_to_ptr.vmem [resolvable:$true] %s548
      %s550 = sshll.u32 %s7, 4
      %s551 = int_to_ptr.hbm [resolvable:$true] %s550
      %553 = dma.vmem_to_hbm [thread:$0]  %s549, 32, %s551, [#allocation4]
    $region33: #{tpu_custom_call.1} parent=1 // pred_fallthru
      _
    // Predicated region
    $region34: #{tpu_custom_call.1} parent=1 // pred_check
      _
    $region35: #{tpu_custom_call.1} parent=1 // pred_check_branch
      %555 = sbr.rel (0) target = $region37
    $region36: #{tpu_custom_call.1} parent=1 // pred_region
      %557 = dma.done [#allocation4], 32
    $region37: #{tpu_custom_call.1} parent=1 // pred_fallthru
      _
    %558 = vsyncpa [#allocation4], 1

</llo_original>
